<compile_context>
chip_gen: v7x
topology: tpu7x:2x2x1
jax: 0.10.0
libtpu: 0.0.40
codegen_flags: <defaults>
</compile_context>

<pallas_src>
import jax
import jax.numpy as jnp
from jax.experimental import pallas as pl
from jax.experimental.pallas import tpu as pltpu


def mlp_kernel(xT_ref, params_ref, b2_ref, oT_ref):
    # xT     : (F, B)        features on sublanes, batch on the 128-lane axis
    # params : (H, F+1+O)    packed [ w1^T | b1 | w2 ]  -- one DMA
    # b2     : (O,)          SMEM scalars
    # oT     : (O, B)        lane-dense output
    F, _B = xT_ref.shape
    O = oT_ref.shape[0]

    xT = xT_ref[...]                                   # (F, B)
    params = params_ref[...]                           # (H, F+1+O)
    w1t = params[:, 0:F]                               # (H, F)
    b1 = params[:, F:F + 1]                            # (H, 1)
    w2 = params[:, F + 1:F + 1 + O]                    # (H, O)

    # Hidden layer: x @ W1 as a VPU outer-product accumulation over the tiny
    # feature dim (F == 1 here); the MXU would be >99% zero padding at K=1.
    acc = w1t[:, 0:1] * xT[0:1, :]                     # (H,1)*(1,B) -> (H,B)
    for f in range(1, F):                              # static, unrolled
        acc = acc + w1t[:, f:f + 1] * xT[f:f + 1, :]
    h = jnp.maximum(acc + b1, 0.0)                     # bias + ReLU, (H, B)

    # Output layer: per output unit, broadcast-multiply by the weight column
    # and reduce over the hidden (sublane) axis; single store for all rows.
    rows = [
        jnp.sum(w2[:, o:o + 1] * h, axis=0, keepdims=True) + b2_ref[o]
        for o in range(O)                              # static, unrolled
    ]
    out = rows[0] if O == 1 else jnp.concatenate(rows, axis=0)   # (O, B)
    oT_ref[...] = out


def _net_forward_impl(x, w1, b1, w2, b2):
    """x: (B, n_feature) f32; w1: (n_feature, n_hidden); b1: (n_hidden,);
    w2: (n_hidden, n_output); b2: (n_output,). Returns (B, n_output) f32."""
    B, F = x.shape
    H = w1.shape[1]
    O = w2.shape[1]

    # Layout plumbing stays in the wrapper: batch -> lane axis. For F == 1 the
    # (B,1)->(1,B) reshape is a pure bitcast (identical row-major data).
    xT = x.reshape(F, B) if F == 1 else x.T            # (F, B)

    # Single packed parameter slab: [ w1^T | b1 | w2 ]  -> (H, F+1+O).
    slab = jnp.concatenate([w1.T, b1.reshape(H, 1), w2], axis=1)
    b2v = b2.reshape(O)                                # SMEM scalars

    flops = 2 * B * H * (F + O)
    bytes_accessed = 4 * (F * B + H * (F + 1 + O) + O + O * B)

    yT = pl.pallas_call(
        mlp_kernel,
        out_shape=jax.ShapeDtypeStruct((O, B), jnp.float32),
        in_specs=[
            pl.BlockSpec(memory_space=pltpu.MemorySpace.VMEM),   # xT
            pl.BlockSpec(memory_space=pltpu.MemorySpace.VMEM),   # packed params
            pl.BlockSpec(memory_space=pltpu.MemorySpace.SMEM),   # b2 scalars
        ],
        out_specs=pl.BlockSpec(memory_space=pltpu.MemorySpace.VMEM),
        cost_estimate=pl.CostEstimate(
            flops=flops, transcendentals=0, bytes_accessed=bytes_accessed),
    )(xT, slab, b2v)

    # (1, B) -> (B, 1) is again a bitcast reshape when O == 1.
    return yT.reshape(B, O) if O == 1 else yT.T


# Jit the whole wrapper so reshape/concat + custom call dispatch as one exec.
net_forward = jax.jit(_net_forward_impl)


def init_params(key, n_feature, n_hidden, n_output):
    """Deterministic parameter init (PyTorch-Linear-style uniform bounds)."""
    k1, k2, k3, k4 = jax.random.split(key, 4)
    bound1 = 1.0 / jnp.sqrt(n_feature)
    bound2 = 1.0 / jnp.sqrt(n_hidden)
    # stored as (in, out) so the math is y = relu(x @ W1 + b1) @ W2 + b2
    w1 = jax.random.uniform(k1, (n_feature, n_hidden), jnp.float32, -bound1, bound1)
    b1 = jax.random.uniform(k2, (n_hidden,), jnp.float32, -bound1, bound1)
    w2 = jax.random.uniform(k3, (n_hidden, n_output), jnp.float32, -bound2, bound2)
    b2 = jax.random.uniform(k4, (n_output,), jnp.float32, -bound2, bound2)
    return w1, b1, w2, b2


if __name__ == "__main__":
    # Small shapes consistent with the module: x = linspace(-1, 1, B).unsqueeze(1)
    # -> n_feature=1; hidden=32, output=1. B=128 so the batch fills the lane axis.
    B, n_feature, n_hidden, n_output = 128, 1, 32, 1

    key = jax.random.PRNGKey(0)
    x = jnp.linspace(-1.0, 1.0, B, dtype=jnp.float32).reshape(B, n_feature)
    w1, b1, w2, b2 = init_params(key, n_feature, n_hidden, n_output)

    y = net_forward(x, w1, b1, w2, b2)
    y = jax.block_until_ready(y)

    # Pure-JAX reference check (matches PyTorch Linear->ReLU->Linear).
    h_ref = jnp.maximum(x @ w1 + b1.reshape(1, -1), 0.0)
    y_ref = h_ref @ w2 + b2.reshape(1, -1)
    assert y.shape == (B, n_output)
    assert jnp.allclose(y, y_ref, atol=1e-5, rtol=1e-5)

    print("KERNEL_OK")
</pallas_src>

<mosaic_0001>
module attributes {stable_mosaic.version = 11 : i64} {
  func.func @mlp_kernel(%arg0: memref<1x128xf32, #tpu.memory_space<vmem>>, %arg1: memref<32x3xf32, #tpu.memory_space<vmem>>, %arg2: memref<1xf32, #tpu.memory_space<smem>>, %arg3: memref<1x128xf32, #tpu.memory_space<vmem>>) attributes {dimension_semantics = [], scalar_prefetch = 0 : i64, scratch_operands = 0 : i64, tpu.core_type = #tpu.core_type<tc>} {
    %c0 = arith.constant 0 : index
    %c0_0 = arith.constant 0 : index
    %0 = vector.load %arg0[%c0, %c0_0] : memref<1x128xf32, #tpu.memory_space<vmem>>, vector<1x128xf32>
    %c0_1 = arith.constant 0 : index
    %c0_2 = arith.constant 0 : index
    %1 = vector.load %arg1[%c0_1, %c0_2] : memref<32x3xf32, #tpu.memory_space<vmem>>, vector<32x3xf32>
    %2 = vector.extract_strided_slice %1 {offsets = [0, 0], sizes = [32, 1], strides = [1, 1]} : vector<32x3xf32> to vector<32x1xf32>
    %3 = vector.extract_strided_slice %1 {offsets = [0, 1], sizes = [32, 1], strides = [1, 1]} : vector<32x3xf32> to vector<32x1xf32>
    %4 = vector.extract_strided_slice %1 {offsets = [0, 2], sizes = [32, 1], strides = [1, 1]} : vector<32x3xf32> to vector<32x1xf32>
    %5 = vector.broadcast %2 : vector<32x1xf32> to vector<32x128xf32>
    %6 = vector.broadcast %0 : vector<1x128xf32> to vector<32x128xf32>
    %7 = arith.mulf %5, %6 : vector<32x128xf32>
    %8 = vector.broadcast %3 : vector<32x1xf32> to vector<32x128xf32>
    %9 = arith.addf %7, %8 : vector<32x128xf32>
    %cst = arith.constant 0.000000e+00 : f32
    %10 = vector.broadcast %cst : f32 to vector<32x128xf32>
    %11 = arith.maximumf %9, %10 : vector<32x128xf32>
    %12 = vector.broadcast %4 : vector<32x1xf32> to vector<32x128xf32>
    %13 = arith.mulf %12, %11 : vector<32x128xf32>
    %cst_3 = arith.constant dense<0.000000e+00> : vector<128xf32>
    %14 = vector.multi_reduction <add>, %13, %cst_3 [0] : vector<32x128xf32> to vector<128xf32>
    %15 = vector.shape_cast %14 : vector<128xf32> to vector<1x128xf32>
    %c0_4 = arith.constant 0 : index
    %16 = memref.load %arg2[%c0_4] : memref<1xf32, #tpu.memory_space<smem>>
    %17 = vector.broadcast %16 : f32 to vector<1x128xf32>
    %18 = arith.addf %15, %17 : vector<1x128xf32>
    %c0_5 = arith.constant 0 : index
    %c0_6 = arith.constant 0 : index
    %19 = vector.load %arg3[%c0_5, %c0_6] : memref<1x128xf32, #tpu.memory_space<vmem>>, vector<1x128xf32>
    tpu.vector_store %arg3[%c0_5, %c0_6], %18 {strides = array<i32>} : memref<1x128xf32, #tpu.memory_space<vmem>>, vector<1x128xf32>,
    return
  }
}

</mosaic_0001>

<llo_original>
// kernel: _net_forward_impl.1
$region0: #{_net_forward_impl.1}
  #allocation0 [shape = 'u32[]', space=smem, size = 0x4, offset = 0x4, fixed_abs, tag = 'smem constant byte address 0x4 - core index']
  #allocation1 [shape = 'u32[144,128]{1,0:T(1,128)}', space=vmem, size = 0x12000, scoped, tag = 'internal scratch']
  #allocation2 [shape = 'f32[1]{0:T(128)S(6)}', space=smem, size = 0x200, scoped, tag = 'scoped memory for _net_forward_impl.1']
  %s0 = inlined_call_operand.vmem [shape: f32[1,128], index: 0, kind: input, shape index: {}]
  %s1 = inlined_call_operand.vmem [shape: f32[32,3], index: 1, kind: input, shape index: {}]
  %s2 = inlined_call_operand.<no memory space> [shape: f32[1], index: 2, kind: input, shape index: {}]
  %s3 = inlined_call_operand.hbm [shape: f32[1,128], index: 3, kind: output, shape index: {}]
  %s4 = sld [smem:[#allocation0]]
  $region22: #{_net_forward_impl.1} parent=0
    _
  %s6 = ssub.s32 1, %s4
  %s7 = scalar_select 0, %s6, %s4
  %8 = sst [smem:[#allocation2]] %s2
  $region1: #{_net_forward_impl.1} parent=0
    #allocation3 [shape = 'u8[512]{0}', space=vmem, size = 0x400, scoped, tag = 'output window, operand 0, single buffered']
    #allocation4 [shape = 's32[1]{0}', space=sflag, size = 0x4, scoped, tag = 'scoped memory for _net_forward_impl.1']
    %9 = vsyncpa [#allocation4], 0
    // Predicated region
    $region2: #{_net_forward_impl.1} parent=1 // pred_check
      _
    $region3: #{_net_forward_impl.1} parent=1 // pred_check_branch
      %11 = sbr.rel (0) target = $region5
    $region4: #{_net_forward_impl.1} parent=1 // pred_region
      _
    $region5: #{_net_forward_impl.1} parent=1 // pred_fallthru
      _
    // Predicated region
    $region6: #{_net_forward_impl.1} parent=1 // pred_check
      _
    $region7: #{_net_forward_impl.1} parent=1 // pred_check_branch
      %13 = sbr.rel (0) target = $region9
    $region8: #{_net_forward_impl.1} parent=1 // pred_region
      _
    $region9: #{_net_forward_impl.1} parent=1 // pred_fallthru
      _
    // Predicated region
    $region10: #{_net_forward_impl.1} parent=1 // pred_check
      _
    $region11: #{_net_forward_impl.1} parent=1 // pred_check_branch
      %15 = sbr.rel (0) target = $region13
    $region12: #{_net_forward_impl.1} parent=1 // pred_region
      _
    $region13: #{_net_forward_impl.1} parent=1 // pred_fallthru
      _
    %v16 = vld [vmem:[%s0] sm:$0x1]
    %v17 = vld [vmem:[%s1] sm:$0xff]
    %v18 = vld [vmem:[%s1 + $0x8] sm:$0xff]
    %v19 = vld [vmem:[%s1 + $0x10] sm:$0xff]
    %v20 = vld [vmem:[%s1 + $0x18] sm:$0xff]
    %22 = vset.pattern.permute.xlu0 0
    %23 = vperm.xlu0 %22, %v17
    %v24 = vpop.permute.xlu0 %23
    %27 = vset.pattern.permute.xlu0 0
    %28 = vperm.xlu0 %27, %v18
    %v29 = vpop.permute.xlu0 %28
    %32 = vset.pattern.permute.xlu0 0
    %33 = vperm.xlu0 %32, %v19
    %v34 = vpop.permute.xlu0 %33
    %37 = vset.pattern.permute.xlu0 0
    %38 = vperm.xlu0 %37, %v20
    %v39 = vpop.permute.xlu0 %38
    %v42 = vlaneseq
    %v43 = vshrl.u32 %v42, 7
    %v44 = vsub.s32 0, %v43
    %v45 = vrot.slane %v16, %v44
    %v47 = vmul.f32 %v24, %v45
    %v48 = vmul.f32 %v29, %v45
    %v49 = vmul.f32 %v34, %v45
    %v50 = vmul.f32 %v39, %v45
    %51 = vset.pattern.permute.xlu0 1
    %52 = vperm.xlu0 %51, %v17
    %v53 = vpop.permute.xlu0 %52
    %55 = vset.pattern.permute.xlu0 1
    %56 = vperm.xlu0 %55, %v18
    %v57 = vpop.permute.xlu0 %56
    %59 = vset.pattern.permute.xlu0 1
    %60 = vperm.xlu0 %59, %v19
    %v61 = vpop.permute.xlu0 %60
    %63 = vset.pattern.permute.xlu0 1
    %64 = vperm.xlu0 %63, %v20
    %v65 = vpop.permute.xlu0 %64
    %v67 = vadd.f32 %v47, %v53
    %v68 = vadd.f32 %v48, %v57
    %v69 = vadd.f32 %v49, %v61
    %v70 = vadd.f32 %v50, %v65
    %v71 = vmax.f32 %v67, 0.0
    %v72 = vmax.f32 %v68, 0.0
    %v73 = vmax.f32 %v69, 0.0
    %v74 = vmax.f32 %v70, 0.0
    %75 = vset.pattern.permute.xlu0 2
    %76 = vperm.xlu0 %75, %v17
    %v77 = vpop.permute.xlu0 %76
    %79 = vset.pattern.permute.xlu0 2
    %80 = vperm.xlu0 %79, %v18
    %v81 = vpop.permute.xlu0 %80
    %83 = vset.pattern.permute.xlu0 2
    %84 = vperm.xlu0 %83, %v19
    %v85 = vpop.permute.xlu0 %84
    %87 = vset.pattern.permute.xlu0 2
    %88 = vperm.xlu0 %87, %v20
    %v89 = vpop.permute.xlu0 %88
    %v91 = vmul.f32 %v77, %v71
    %v92 = vmul.f32 %v81, %v72
    %v93 = vmul.f32 %v85, %v73
    %v94 = vmul.f32 %v89, %v74
    %v95 = vadd.f32 %v91, %v92
    %v96 = vadd.f32 %v95, %v93
    %v97 = vadd.f32 %v96, %v94
    %v98 = vrot.slane %v97, 4
    %v99 = vadd.f32 %v97, %v98
    %v100 = vrot.slane %v99, 2
    %v101 = vadd.f32 %v99, %v100
    %v102 = vrot.slane %v101, 1
    %v103 = vadd.f32 %v101, %v102
    %s104 = sld [smem:[#allocation2]]
    %v105 = vstv %s104
    %v106 = vadd.f32 %v103, %v105
    %107 = vst [vmem:[#allocation3] sm:$0x1] %v106
    // Predicated region
    $region14: #{_net_forward_impl.1} parent=1 // pred_check
      _
    $region15: #{_net_forward_impl.1} parent=1 // pred_check_branch
      %109 = sbr.rel (0) target = $region17
    $region16: #{_net_forward_impl.1} parent=1 // pred_region
      %s111 = ssub.s32 16, 16
      %112 = vsyncadd [#allocation4], %s111
      %s114 = sshll.u32 [#allocation3], 4
      %s115 = int_to_ptr.vmem [resolvable:$true] %s114
      %117 = dma.vmem_to_hbm [thread:$0]  %s115, 16, %s3, [#allocation4]
    $region17: #{_net_forward_impl.1} parent=1 // pred_fallthru
      _
    // Predicated region
    $region18: #{_net_forward_impl.1} parent=1 // pred_check
      _
    $region19: #{_net_forward_impl.1} parent=1 // pred_check_branch
      %119 = sbr.rel (0) target = $region21
    $region20: #{_net_forward_impl.1} parent=1 // pred_region
      %120 = dma.done [#allocation4], 16
    $region21: #{_net_forward_impl.1} parent=1 // pred_fallthru
      _
    %121 = vsyncpa [#allocation4], 1

</llo_original>
